<compile_context>
chip_gen: v7x
topology: tpu7x:2x2x1
jax: 0.10.0
libtpu: 0.0.40
codegen_flags: <defaults>
</compile_context>

<pallas_src>
import functools

import jax
import jax.numpy as jnp
from jax.experimental import pallas as pl
from jax.experimental.pallas import tpu as pltpu


def _round_up(v, m):
    return ((v + m - 1) // m) * m


def _linear_kernel(x_ref, w_ref, b_ref, o_ref):
    # x_ref: (TM, K)  w_ref: (K, TN)  b_ref: (1, TN)  o_ref: (TM, TN)
    acc = jnp.dot(x_ref[...], w_ref[...], preferred_element_type=jnp.float32)
    o_ref[...] = (acc + b_ref[...].astype(jnp.float32)).astype(o_ref.dtype)


def prepare_classifier_params(weight, bias, *, tn=256, dtype=None):
    """One-time parameter prep (hoisted out of forward).

    PyTorch Linear stores weight as (n_output, n_feature); we store it
    transposed and lane-padded as (n_feature, N_pad) so the kernel does
    x @ W_t + b directly on the MXU with no per-call transpose/pad traffic.
    """
    n_output, k = weight.shape
    dtype = dtype or weight.dtype
    n_pad = _round_up(n_output, tn)
    w_t = jnp.zeros((k, n_pad), dtype).at[:, :n_output].set(weight.T.astype(dtype))
    b_p = jnp.zeros((1, n_pad), jnp.float32).at[0, :n_output].set(
        bias.astype(jnp.float32)
    )
    return w_t, b_p


@functools.partial(jax.jit, static_argnames=("n_output", "tn"))
def classifier_forward(x, w_t, b_p, *, n_output, tn=256):
    """Pallas equivalent of Classifier.forward: self.out(x) i.e. Linear."""
    m, k = x.shape
    k_w, n_pad = w_t.shape
    assert k == k_w, (k, k_w)
    assert n_pad % tn == 0, (n_pad, tn)

    # --- Tile selection -----------------------------------------------------
    # Minimum sublane tile: 8 rows for f32, 16 for bf16 (packed sublanes).
    sublane = 8 if x.dtype == jnp.float32 else 16
    tm = min(256, _round_up(m, sublane))

    # Keep double-buffered blocks under v7x's scoped-VMEM budget.
    itemsize = jnp.dtype(jnp.float32).itemsize

    def vmem_bytes(tm_, tn_):
        # 2x for double buffering of x, W, b tiles and the output tile.
        return (2 * tm_ * k + 2 * k * tn_ + 2 * tn_ + 2 * tm_ * tn_) * itemsize

    budget = 24 * 1024 * 1024
    tn_eff = tn
    while vmem_bytes(tm, tn_eff) > budget and tn_eff > 256:
        tn_eff //= 2
    while vmem_bytes(tm, tn_eff) > budget and tm > sublane:
        tm = max(sublane, tm // 2)

    # --- Pad M only if needed (skip the copy when already aligned) ----------
    m_pad = _round_up(m, tm)
    x_p = x if m_pad == m else jnp.zeros((m_pad, k), x.dtype).at[:m, :].set(x)

    grid = (n_pad // tn_eff, m_pad // tm)  # N outer, M inner -> weight resident

    cost = pl.CostEstimate(
        flops=2 * m_pad * k * n_pad,
        transcendentals=0,
        bytes_accessed=(
            x_p.size * x_p.dtype.itemsize
            + w_t.size * w_t.dtype.itemsize
            + b_p.size * b_p.dtype.itemsize
            + m_pad * n_pad * x.dtype.itemsize
        ),
    )

    out_padded = pl.pallas_call(
        _linear_kernel,
        out_shape=jax.ShapeDtypeStruct((m_pad, n_pad), x.dtype),
        grid_spec=pltpu.PrefetchScalarGridSpec(
            num_scalar_prefetch=0,
            grid=grid,
            in_specs=[
                pl.BlockSpec((tm, k), lambda j, i: (i, 0)),       # x tile
                pl.BlockSpec((k, tn_eff), lambda j, i: (0, j)),   # W tile (resident over i)
                pl.BlockSpec((1, tn_eff), lambda j, i: (0, j)),   # bias tile
            ],
            out_specs=pl.BlockSpec((tm, tn_eff), lambda j, i: (i, j)),
        ),
        compiler_params=pltpu.CompilerParams(
            dimension_semantics=("parallel", "parallel"),
            vmem_limit_bytes=32 * 1024 * 1024,
        ),
        cost_estimate=cost,
    )(x_p, w_t, b_p)

    return out_padded[:m, :n_output]


def init_classifier_params(key, n_feature=512, n_output=250, dtype=jnp.float32):
    """Deterministic init mimicking torch.nn.Linear default (uniform +-1/sqrt(fan_in))."""
    k_w, k_b = jax.random.split(key)
    bound = 1.0 / jnp.sqrt(jnp.asarray(n_feature, dtype))
    weight = jax.random.uniform(
        k_w, (n_output, n_feature), dtype, minval=-bound, maxval=bound
    )
    bias = jax.random.uniform(k_b, (n_output,), dtype, minval=-bound, maxval=bound)
    return weight, bias


if __name__ == "__main__":
    n_feature, n_output = 512, 250

    key = jax.random.PRNGKey(0)
    k_x, k_p, k_x2 = jax.random.split(key, 3)

    weight, bias = init_classifier_params(k_p, n_feature, n_output)
    # One-time param prep (transpose + pad) -- hoisted out of the forward path.
    w_t, b_p = prepare_classifier_params(weight, bias)

    # Small batch (module-default head shapes).
    batch = 8
    x = jax.random.normal(k_x, (batch, n_feature), jnp.float32)
    out = classifier_forward(x, w_t, b_p, n_output=n_output)
    jax.block_until_ready(out)
    ref = x @ weight.T + bias
    assert out.shape == (batch, n_output), out.shape
    assert jnp.allclose(out, ref, atol=1e-4, rtol=1e-4), float(
        jnp.max(jnp.abs(out - ref))
    )

    # Larger batch exercises the multi-tile M grid + M-padding path.
    batch2 = 384
    x2 = jax.random.normal(k_x2, (batch2, n_feature), jnp.float32)
    out2 = classifier_forward(x2, w_t, b_p, n_output=n_output)
    jax.block_until_ready(out2)
    ref2 = x2 @ weight.T + bias
    assert out2.shape == (batch2, n_output), out2.shape
    assert jnp.allclose(out2, ref2, atol=1e-4, rtol=1e-4), float(
        jnp.max(jnp.abs(out2 - ref2))
    )

    print("KERNEL_OK")
</pallas_src>

<mosaic_0001>
module attributes {stable_mosaic.version = 11 : i64} {
  func.func @_linear_kernel(%arg0: i32, %arg1: i32, %arg2: memref<8x512xf32, #tpu.memory_space<vmem>>, %arg3: memref<512x256xf32, #tpu.memory_space<vmem>>, %arg4: memref<1x256xf32, #tpu.memory_space<vmem>>, %arg5: memref<8x256xf32, #tpu.memory_space<vmem>>) attributes {dimension_semantics = [#tpu.dimension_semantics<parallel>, #tpu.dimension_semantics<parallel>], iteration_bounds = array<i64: 1, 1>, scalar_prefetch = 0 : i64, scratch_operands = 0 : i64, tpu.core_type = #tpu.core_type<tc>, window_params = [{transform_indices = @transform_0, window_bounds = array<i64: 8, 512>}, {transform_indices = @transform_1, window_bounds = array<i64: 512, 256>}, {transform_indices = @transform_2, window_bounds = array<i64: 1, 256>}, {transform_indices = @transform_3, window_bounds = array<i64: 8, 256>}]} {
    %c0 = arith.constant 0 : index
    %c0_0 = arith.constant 0 : index
    %0 = vector.load %arg2[%c0, %c0_0] : memref<8x512xf32, #tpu.memory_space<vmem>>, vector<8x512xf32>
    %c0_1 = arith.constant 0 : index
    %c0_2 = arith.constant 0 : index
    %1 = vector.load %arg3[%c0_1, %c0_2] : memref<512x256xf32, #tpu.memory_space<vmem>>, vector<512x256xf32>
    %cst = arith.constant dense<0.000000e+00> : vector<8x256xf32>
    %2 = tpu.matmul %0, %1, %cst {dimension_numbers = #tpu.dot_dimension_numbers<[1], [0], [0], [1], [0, 0, 1, 1], [], []>} : vector<8x512xf32>, vector<512x256xf32>, vector<8x256xf32> -> vector<8x256xf32>
    %c0_3 = arith.constant 0 : index
    %c0_4 = arith.constant 0 : index
    %3 = vector.load %arg4[%c0_3, %c0_4] : memref<1x256xf32, #tpu.memory_space<vmem>>, vector<1x256xf32>
    %4 = vector.broadcast %3 : vector<1x256xf32> to vector<8x256xf32>
    %5 = arith.addf %2, %4 : vector<8x256xf32>
    %c0_5 = arith.constant 0 : index
    %c0_6 = arith.constant 0 : index
    %6 = vector.load %arg5[%c0_5, %c0_6] : memref<8x256xf32, #tpu.memory_space<vmem>>, vector<8x256xf32>
    tpu.vector_store %arg5[%c0_5, %c0_6], %5 {strides = array<i32>} : memref<8x256xf32, #tpu.memory_space<vmem>>, vector<8x256xf32>,
    return
  }
  func.func @transform_0(%arg0: i32, %arg1: i32) -> (i32, i32) {
    %c0_i32 = arith.constant 0 : i32
    %c0_i32_0 = arith.constant 0 : i32
    return %arg1, %c0_i32 : i32, i32
  }
  func.func @transform_1(%arg0: i32, %arg1: i32) -> (i32, i32) {
    %c0_i32 = arith.constant 0 : i32
    %c0_i32_0 = arith.constant 0 : i32
    return %c0_i32, %arg0 : i32, i32
  }
  func.func @transform_2(%arg0: i32, %arg1: i32) -> (i32, i32) {
    %c0_i32 = arith.constant 0 : i32
    %c0_i32_0 = arith.constant 0 : i32
    return %c0_i32, %arg0 : i32, i32
  }
  func.func @transform_3(%arg0: i32, %arg1: i32) -> (i32, i32) {
    %c0_i32 = arith.constant 0 : i32
    return %arg1, %arg0 : i32, i32
  }
}

</mosaic_0001>

<llo_original>
// kernel: classifier_forward.1
$region0: #{classifier_forward.1}
  #allocation0 [shape = 'u32[]', space=smem, size = 0x4, offset = 0x4, fixed_abs, tag = 'smem constant byte address 0x4 - core index']
  #allocation1 [shape = 'u32[144,128]{1,0:T(1,128)}', space=vmem, size = 0x12000, scoped, tag = 'internal scratch']
  %s0 = inlined_call_operand.hbm [shape: f32[8,512], index: 0, kind: input, shape index: {}]
  %s1 = inlined_call_operand.hbm [shape: f32[512,256], index: 1, kind: input, shape index: {}]
  %s2 = inlined_call_operand.vmem [shape: f32[1,256], index: 2, kind: input, shape index: {}]
  %s3 = inlined_call_operand.hbm [shape: f32[8,256], index: 3, kind: output, shape index: {}]
  %s4 = sld [smem:[#allocation0]]
  $region30: #{classifier_forward.1} parent=0
    _
  %s6 = ssub.s32 1, %s4
  %s7 = scalar_select 0, %s6, %s4
  $region1: #{classifier_forward.1} parent=0
    #allocation2 [shape = 'u8[16384]{0}', space=vmem, size = 0x4000, scoped, tag = 'input window, operand 0, single buffered']
    #allocation3 [shape = 's32[1]{0}', space=sflag, size = 0x4, scoped, tag = 'scoped memory for classifier_forward.1']
    #allocation4 [shape = 's32[1]{0}', space=sflag, size = 0x4, scoped, tag = 'scoped memory for classifier_forward.1']
    #allocation5 [shape = 'u8[524288]{0}', space=vmem, size = 0x80000, scoped, tag = 'input window, operand 1, single buffered']
    #allocation6 [shape = 's32[1]{0}', space=sflag, size = 0x4, scoped, tag = 'scoped memory for classifier_forward.1']
    #allocation7 [shape = 'u8[8192]{0}', space=vmem, size = 0x2000, scoped, tag = 'output window, operand 0, single buffered']
    %8 = vsyncpa [#allocation3], 0
    %9 = vsyncpa [#allocation6], 0
    %10 = vsyncpa [#allocation4], 0
    // Predicated region
    $region2: #{classifier_forward.1} parent=1 // pred_check
      _
    $region3: #{classifier_forward.1} parent=1 // pred_check_branch
      %12 = sbr.rel (0) target = $region5
    $region4: #{classifier_forward.1} parent=1 // pred_region
      %s14 = ssub.s32 512, 512
      %15 = vsyncadd [#allocation3], %s14
      %s17 = sshll.u32 [#allocation2], 4
      %s18 = int_to_ptr.vmem [resolvable:$true] %s17
      %20 = dma.hbm_to_vmem [thread:$0]  %s0, 512, %s18, [#allocation3]
    $region5: #{classifier_forward.1} parent=1 // pred_fallthru
      _
    // Predicated region
    $region6: #{classifier_forward.1} parent=1 // pred_check
      _
    $region7: #{classifier_forward.1} parent=1 // pred_check_branch
      %22 = sbr.rel (0) target = $region9
    $region8: #{classifier_forward.1} parent=1 // pred_region
      %s24 = ssub.s32 16384, 16384
      %25 = vsyncadd [#allocation6], %s24
      %s26 = sshll.u32 [#allocation5], 4
      %s27 = int_to_ptr.vmem [resolvable:$true] %s26
      %32 = dma.hbm_to_vmem [thread:$0]  %s1, 16384, %s27, [#allocation6], 256, 256, 16
    $region9: #{classifier_forward.1} parent=1 // pred_fallthru
      _
    // Predicated region
    $region10: #{classifier_forward.1} parent=1 // pred_check
      _
    $region11: #{classifier_forward.1} parent=1 // pred_check_branch
      %34 = sbr.rel (0) target = $region13
    $region12: #{classifier_forward.1} parent=1 // pred_region
      _
    $region13: #{classifier_forward.1} parent=1 // pred_fallthru
      _
    // Predicated region
    $region14: #{classifier_forward.1} parent=1 // pred_check
      _
    $region15: #{classifier_forward.1} parent=1 // pred_check_branch
      %36 = sbr.rel (0) target = $region17
    $region16: #{classifier_forward.1} parent=1 // pred_region
      %37 = dma.done [#allocation3], 512
    $region17: #{classifier_forward.1} parent=1 // pred_fallthru
      _
    // Predicated region
    $region18: #{classifier_forward.1} parent=1 // pred_check
      _
    $region19: #{classifier_forward.1} parent=1 // pred_check_branch
      %39 = sbr.rel (0) target = $region21
    $region20: #{classifier_forward.1} parent=1 // pred_region
      %40 = dma.done [#allocation6], 16384
    $region21: #{classifier_forward.1} parent=1 // pred_fallthru
      _
    %v41 = vld [vmem:[#allocation2] sm:$0xff]
    %v42 = vld [vmem:[#allocation2 + $0x8] sm:$0xff]
    %v43 = vld [vmem:[#allocation2 + $0x10] sm:$0xff]
    %v44 = vld [vmem:[#allocation2 + $0x18] sm:$0xff]
    %v45 = vld [vmem:[#allocation5] sm:$0xff]
    %v46 = vld [vmem:[#allocation5 + $0x8] sm:$0xff]
    %v47 = vld [vmem:[#allocation5 + $0x10] sm:$0xff]
    %v48 = vld [vmem:[#allocation5 + $0x18] sm:$0xff]
    %v49 = vld [vmem:[#allocation5 + $0x20] sm:$0xff]
    %v50 = vld [vmem:[#allocation5 + $0x28] sm:$0xff]
    %v51 = vld [vmem:[#allocation5 + $0x30] sm:$0xff]
    %v52 = vld [vmem:[#allocation5 + $0x38] sm:$0xff]
    %v53 = vld [vmem:[#allocation5 + $0x40] sm:$0xff]
    %v54 = vld [vmem:[#allocation5 + $0x48] sm:$0xff]
    %v55 = vld [vmem:[#allocation5 + $0x50] sm:$0xff]
    %v56 = vld [vmem:[#allocation5 + $0x58] sm:$0xff]
    %v57 = vld [vmem:[#allocation5 + $0x60] sm:$0xff]
    %v58 = vld [vmem:[#allocation5 + $0x68] sm:$0xff]
    %v59 = vld [vmem:[#allocation5 + $0x70] sm:$0xff]
    %v60 = vld [vmem:[#allocation5 + $0x78] sm:$0xff]
    %v61 = vld [vmem:[#allocation5 + $0x80] sm:$0xff]
    %v62 = vld [vmem:[#allocation5 + $0x88] sm:$0xff]
    %v63 = vld [vmem:[#allocation5 + $0x90] sm:$0xff]
    %v64 = vld [vmem:[#allocation5 + $0x98] sm:$0xff]
    %v65 = vld [vmem:[#allocation5 + $0xa0] sm:$0xff]
    %v66 = vld [vmem:[#allocation5 + $0xa8] sm:$0xff]
    %v67 = vld [vmem:[#allocation5 + $0xb0] sm:$0xff]
    %v68 = vld [vmem:[#allocation5 + $0xb8] sm:$0xff]
    %v69 = vld [vmem:[#allocation5 + $0xc0] sm:$0xff]
    %v70 = vld [vmem:[#allocation5 + $0xc8] sm:$0xff]
    %v71 = vld [vmem:[#allocation5 + $0xd0] sm:$0xff]
    %v72 = vld [vmem:[#allocation5 + $0xd8] sm:$0xff]
    %v73 = vld [vmem:[#allocation5 + $0xe0] sm:$0xff]
    %v74 = vld [vmem:[#allocation5 + $0xe8] sm:$0xff]
    %v75 = vld [vmem:[#allocation5 + $0xf0] sm:$0xff]
    %v76 = vld [vmem:[#allocation5 + $0xf8] sm:$0xff]
    %v77 = vld [vmem:[#allocation5 + $0x100] sm:$0xff]
    %v78 = vld [vmem:[#allocation5 + $0x108] sm:$0xff]
    %v79 = vld [vmem:[#allocation5 + $0x110] sm:$0xff]
    %v80 = vld [vmem:[#allocation5 + $0x118] sm:$0xff]
    %v81 = vld [vmem:[#allocation5 + $0x120] sm:$0xff]
    %v82 = vld [vmem:[#allocation5 + $0x128] sm:$0xff]
    %v83 = vld [vmem:[#allocation5 + $0x130] sm:$0xff]
    %v84 = vld [vmem:[#allocation5 + $0x138] sm:$0xff]
    %v85 = vld [vmem:[#allocation5 + $0x140] sm:$0xff]
    %v86 = vld [vmem:[#allocation5 + $0x148] sm:$0xff]
    %v87 = vld [vmem:[#allocation5 + $0x150] sm:$0xff]
    %v88 = vld [vmem:[#allocation5 + $0x158] sm:$0xff]
    %v89 = vld [vmem:[#allocation5 + $0x160] sm:$0xff]
    %v90 = vld [vmem:[#allocation5 + $0x168] sm:$0xff]
    %v91 = vld [vmem:[#allocation5 + $0x170] sm:$0xff]
    %v92 = vld [vmem:[#allocation5 + $0x178] sm:$0xff]
    %v93 = vld [vmem:[#allocation5 + $0x180] sm:$0xff]
    %v94 = vld [vmem:[#allocation5 + $0x188] sm:$0xff]
    %v95 = vld [vmem:[#allocation5 + $0x190] sm:$0xff]
    %v96 = vld [vmem:[#allocation5 + $0x198] sm:$0xff]
    %v97 = vld [vmem:[#allocation5 + $0x1a0] sm:$0xff]
    %v98 = vld [vmem:[#allocation5 + $0x1a8] sm:$0xff]
    %v99 = vld [vmem:[#allocation5 + $0x1b0] sm:$0xff]
    %v100 = vld [vmem:[#allocation5 + $0x1b8] sm:$0xff]
    %v101 = vld [vmem:[#allocation5 + $0x1c0] sm:$0xff]
    %v102 = vld [vmem:[#allocation5 + $0x1c8] sm:$0xff]
    %v103 = vld [vmem:[#allocation5 + $0x1d0] sm:$0xff]
    %v104 = vld [vmem:[#allocation5 + $0x1d8] sm:$0xff]
    %v105 = vld [vmem:[#allocation5 + $0x1e0] sm:$0xff]
    %v106 = vld [vmem:[#allocation5 + $0x1e8] sm:$0xff]
    %v107 = vld [vmem:[#allocation5 + $0x1f0] sm:$0xff]
    %v108 = vld [vmem:[#allocation5 + $0x1f8] sm:$0xff]
    %v109 = vld [vmem:[#allocation5 + $0x200] sm:$0xff]
    %v110 = vld [vmem:[#allocation5 + $0x208] sm:$0xff]
    %v111 = vld [vmem:[#allocation5 + $0x210] sm:$0xff]
    %v112 = vld [vmem:[#allocation5 + $0x218] sm:$0xff]
    %v113 = vld [vmem:[#allocation5 + $0x220] sm:$0xff]
    %v114 = vld [vmem:[#allocation5 + $0x228] sm:$0xff]
    %v115 = vld [vmem:[#allocation5 + $0x230] sm:$0xff]
    %v116 = vld [vmem:[#allocation5 + $0x238] sm:$0xff]
    %v117 = vld [vmem:[#allocation5 + $0x240] sm:$0xff]
    %v118 = vld [vmem:[#allocation5 + $0x248] sm:$0xff]
    %v119 = vld [vmem:[#allocation5 + $0x250] sm:$0xff]
    %v120 = vld [vmem:[#allocation5 + $0x258] sm:$0xff]
    %v121 = vld [vmem:[#allocation5 + $0x260] sm:$0xff]
    %v122 = vld [vmem:[#allocation5 + $0x268] sm:$0xff]
    %v123 = vld [vmem:[#allocation5 + $0x270] sm:$0xff]
    %v124 = vld [vmem:[#allocation5 + $0x278] sm:$0xff]
    %v125 = vld [vmem:[#allocation5 + $0x280] sm:$0xff]
    %v126 = vld [vmem:[#allocation5 + $0x288] sm:$0xff]
    %v127 = vld [vmem:[#allocation5 + $0x290] sm:$0xff]
    %v128 = vld [vmem:[#allocation5 + $0x298] sm:$0xff]
    %v129 = vld [vmem:[#allocation5 + $0x2a0] sm:$0xff]
    %v130 = vld [vmem:[#allocation5 + $0x2a8] sm:$0xff]
    %v131 = vld [vmem:[#allocation5 + $0x2b0] sm:$0xff]
    %v132 = vld [vmem:[#allocation5 + $0x2b8] sm:$0xff]
    %v133 = vld [vmem:[#allocation5 + $0x2c0] sm:$0xff]
    %v134 = vld [vmem:[#allocation5 + $0x2c8] sm:$0xff]
    %v135 = vld [vmem:[#allocation5 + $0x2d0] sm:$0xff]
    %v136 = vld [vmem:[#allocation5 + $0x2d8] sm:$0xff]
    %v137 = vld [vmem:[#allocation5 + $0x2e0] sm:$0xff]
    %v138 = vld [vmem:[#allocation5 + $0x2e8] sm:$0xff]
    %v139 = vld [vmem:[#allocation5 + $0x2f0] sm:$0xff]
    %v140 = vld [vmem:[#allocation5 + $0x2f8] sm:$0xff]
    %v141 = vld [vmem:[#allocation5 + $0x300] sm:$0xff]
    %v142 = vld [vmem:[#allocation5 + $0x308] sm:$0xff]
    %v143 = vld [vmem:[#allocation5 + $0x310] sm:$0xff]
    %v144 = vld [vmem:[#allocation5 + $0x318] sm:$0xff]
    %v145 = vld [vmem:[#allocation5 + $0x320] sm:$0xff]
    %v146 = vld [vmem:[#allocation5 + $0x328] sm:$0xff]
    %v147 = vld [vmem:[#allocation5 + $0x330] sm:$0xff]
    %v148 = vld [vmem:[#allocation5 + $0x338] sm:$0xff]
    %v149 = vld [vmem:[#allocation5 + $0x340] sm:$0xff]
    %v150 = vld [vmem:[#allocation5 + $0x348] sm:$0xff]
    %v151 = vld [vmem:[#allocation5 + $0x350] sm:$0xff]
    %v152 = vld [vmem:[#allocation5 + $0x358] sm:$0xff]
    %v153 = vld [vmem:[#allocation5 + $0x360] sm:$0xff]
    %v154 = vld [vmem:[#allocation5 + $0x368] sm:$0xff]
    %v155 = vld [vmem:[#allocation5 + $0x370] sm:$0xff]
    %v156 = vld [vmem:[#allocation5 + $0x378] sm:$0xff]
    %v157 = vld [vmem:[#allocation5 + $0x380] sm:$0xff]
    %v158 = vld [vmem:[#allocation5 + $0x388] sm:$0xff]
    %v159 = vld [vmem:[#allocation5 + $0x390] sm:$0xff]
    %v160 = vld [vmem:[#allocation5 + $0x398] sm:$0xff]
    %v161 = vld [vmem:[#allocation5 + $0x3a0] sm:$0xff]
    %v162 = vld [vmem:[#allocation5 + $0x3a8] sm:$0xff]
    %v163 = vld [vmem:[#allocation5 + $0x3b0] sm:$0xff]
    %v164 = vld [vmem:[#allocation5 + $0x3b8] sm:$0xff]
    %v165 = vld [vmem:[#allocation5 + $0x3c0] sm:$0xff]
    %v166 = vld [vmem:[#allocation5 + $0x3c8] sm:$0xff]
    %v167 = vld [vmem:[#allocation5 + $0x3d0] sm:$0xff]
    %v168 = vld [vmem:[#allocation5 + $0x3d8] sm:$0xff]
    %v169 = vld [vmem:[#allocation5 + $0x3e0] sm:$0xff]
    %v170 = vld [vmem:[#allocation5 + $0x3e8] sm:$0xff]
    %v171 = vld [vmem:[#allocation5 + $0x3f0] sm:$0xff]
    %v172 = vld [vmem:[#allocation5 + $0x3f8] sm:$0xff]
    %v173 = vld [vmem:[%s2] sm:$0x3]
    %v175 = vlaneseq
    %v176 = vshrl.u32 %v175, 7
    %v177 = vsub.s32 0, %v176
    %v178 = vrot.slane %v173, %v177
    %v179 = vlaneseq
    %v180 = vshrl.u32 %v179, 7
    %v181 = vsub.s32 1, %v180
    %v182 = vrot.slane %v173, %v181
    %185 = vmatprep.subr.mxu0 %v46
    %186 = vmatpush1.msra.mxu0 %v45
    %187 = vmatprep.subr.mxu0 %v48
    %188 = vmatpush1.msra.mxu0 %v47
    %189 = vmatprep.subr.mxu0 %v50
    %190 = vmatpush1.msra.mxu0 %v49
    %191 = vmatprep.subr.mxu0 %v52
    %192 = vmatpush1.msra.mxu0 %v51
    %193 = vmatprep.subr.mxu0 %v54
    %194 = vmatpush1.msra.mxu0 %v53
    %195 = vmatprep.subr.mxu0 %v56
    %196 = vmatpush1.msra.mxu0 %v55
    %197 = vmatprep.subr.mxu0 %v58
    %198 = vmatpush1.msra.mxu0 %v57
    %199 = vmatprep.subr.mxu0 %v60
    %200 = vmatpush1.msra.mxu0 %v59
    %201 = vmatprep.subr.mxu0 %v62
    %202 = vmatpush1.msra.mxu0 %v61
    %203 = vmatprep.subr.mxu0 %v64
    %204 = vmatpush1.msra.mxu0 %v63
    %205 = vmatprep.subr.mxu0 %v66
    %206 = vmatpush1.msra.mxu0 %v65
    %207 = vmatprep.subr.mxu0 %v68
    %208 = vmatpush1.msra.mxu0 %v67
    %209 = vmatprep.subr.mxu0 %v70
    %210 = vmatpush1.msra.mxu0 %v69
    %211 = vmatprep.subr.mxu0 %v72
    %212 = vmatpush1.msra.mxu0 %v71
    %213 = vmatprep.subr.mxu0 %v74
    %214 = vmatpush1.msra.mxu0 %v73
    %215 = vmatprep.subr.mxu0 %v76
    %216 = vmatpush1.msra.mxu0 %v75
    %217 = vmatprep.subr.mxu0 %v78
    %218 = vmatpush1.msra.mxu0 %v77
    %219 = vmatprep.subr.mxu0 %v80
    %220 = vmatpush1.msra.mxu0 %v79
    %221 = vmatprep.subr.mxu0 %v82
    %222 = vmatpush1.msra.mxu0 %v81
    %223 = vmatprep.subr.mxu0 %v84
    %224 = vmatpush1.msra.mxu0 %v83
    %225 = vmatprep.subr.mxu0 %v86
    %226 = vmatpush1.msra.mxu0 %v85
    %227 = vmatprep.subr.mxu0 %v88
    %228 = vmatpush1.msra.mxu0 %v87
    %229 = vmatprep.subr.mxu0 %v90
    %230 = vmatpush1.msra.mxu0 %v89
    %231 = vmatprep.subr.mxu0 %v92
    %232 = vmatpush1.msra.mxu0 %v91
    %233 = vmatprep.subr.mxu0 %v94
    %234 = vmatpush1.msra.mxu0 %v93
    %235 = vmatprep.subr.mxu0 %v96
    %236 = vmatpush1.msra.mxu0 %v95
    %237 = vmatprep.subr.mxu0 %v98
    %238 = vmatpush1.msra.mxu0 %v97
    %239 = vmatprep.subr.mxu0 %v100
    %240 = vmatpush1.msra.mxu0 %v99
    %241 = vmatprep.subr.mxu0 %v102
    %242 = vmatpush1.msra.mxu0 %v101
    %243 = vmatprep.subr.mxu0 %v104
    %244 = vmatpush1.msra.mxu0 %v103
    %245 = vmatprep.subr.mxu0 %v106
    %246 = vmatpush1.msra.mxu0 %v105
    %247 = vmatprep.subr.mxu0 %v108
    %248 = vmatpush1.msra.mxu0 %v107
    %249 = vmatprep.mubr.f32.mxu0 %v42
    %250 = vmatmul.mubr.f32.gmra.mrb[0].mxu0 %v41
    %v251 = vpop.f32.mrb[0].mxu0
    %v252 = vadd.f32 %v178, %v251
    %v253 = vpop.f32.mrb[0].mxu0
    %v254 = vadd.f32 %v182, %v253
    %255 = vdwg.mxu0
    %256 = vmatprep.subr.mxu0 %v110
    %257 = vmatpush1.msra.mxu0 %v109
    %258 = vmatprep.subr.mxu0 %v112
    %259 = vmatpush1.msra.mxu0 %v111
    %260 = vmatprep.subr.mxu0 %v114
    %261 = vmatpush1.msra.mxu0 %v113
    %262 = vmatprep.subr.mxu0 %v116
    %263 = vmatpush1.msra.mxu0 %v115
    %264 = vmatprep.subr.mxu0 %v118
    %265 = vmatpush1.msra.mxu0 %v117
    %266 = vmatprep.subr.mxu0 %v120
    %267 = vmatpush1.msra.mxu0 %v119
    %268 = vmatprep.subr.mxu0 %v122
    %269 = vmatpush1.msra.mxu0 %v121
    %270 = vmatprep.subr.mxu0 %v124
    %271 = vmatpush1.msra.mxu0 %v123
    %272 = vmatprep.subr.mxu0 %v126
    %273 = vmatpush1.msra.mxu0 %v125
    %274 = vmatprep.subr.mxu0 %v128
    %275 = vmatpush1.msra.mxu0 %v127
    %276 = vmatprep.subr.mxu0 %v130
    %277 = vmatpush1.msra.mxu0 %v129
    %278 = vmatprep.subr.mxu0 %v132
    %279 = vmatpush1.msra.mxu0 %v131
    %280 = vmatprep.subr.mxu0 %v134
    %281 = vmatpush1.msra.mxu0 %v133
    %282 = vmatprep.subr.mxu0 %v136
    %283 = vmatpush1.msra.mxu0 %v135
    %284 = vmatprep.subr.mxu0 %v138
    %285 = vmatpush1.msra.mxu0 %v137
    %286 = vmatprep.subr.mxu0 %v140
    %287 = vmatpush1.msra.mxu0 %v139
    %288 = vmatprep.subr.mxu0 %v142
    %289 = vmatpush1.msra.mxu0 %v141
    %290 = vmatprep.subr.mxu0 %v144
    %291 = vmatpush1.msra.mxu0 %v143
    %292 = vmatprep.subr.mxu0 %v146
    %293 = vmatpush1.msra.mxu0 %v145
    %294 = vmatprep.subr.mxu0 %v148
    %295 = vmatpush1.msra.mxu0 %v147
    %296 = vmatprep.subr.mxu0 %v150
    %297 = vmatpush1.msra.mxu0 %v149
    %298 = vmatprep.subr.mxu0 %v152
    %299 = vmatpush1.msra.mxu0 %v151
    %300 = vmatprep.subr.mxu0 %v154
    %301 = vmatpush1.msra.mxu0 %v153
    %302 = vmatprep.subr.mxu0 %v156
    %303 = vmatpush1.msra.mxu0 %v155
    %304 = vmatprep.subr.mxu0 %v158
    %305 = vmatpush1.msra.mxu0 %v157
    %306 = vmatprep.subr.mxu0 %v160
    %307 = vmatpush1.msra.mxu0 %v159
    %308 = vmatprep.subr.mxu0 %v162
    %309 = vmatpush1.msra.mxu0 %v161
    %310 = vmatprep.subr.mxu0 %v164
    %311 = vmatpush1.msra.mxu0 %v163
    %312 = vmatprep.subr.mxu0 %v166
    %313 = vmatpush1.msra.mxu0 %v165
    %314 = vmatprep.subr.mxu0 %v168
    %315 = vmatpush1.msra.mxu0 %v167
    %316 = vmatprep.subr.mxu0 %v170
    %317 = vmatpush1.msra.mxu0 %v169
    %318 = vmatprep.subr.mxu0 %v172
    %319 = vmatpush1.msra.mxu0 %v171
    %320 = vmatprep.mubr.f32.mxu0 %v44
    %321 = vmatmul.mubr.f32.gmra.mrb[0].mxu0 %v43
    %v322 = vpop.f32.mrb[0].mxu0
    %v323 = vadd.f32 %v252, %v322
    %v324 = vpop.f32.mrb[0].mxu0
    %v325 = vadd.f32 %v254, %v324
    %326 = vdwg.mxu0
    %327 = vst [vmem:[#allocation7] sm:$0xff] %v323
    %328 = vst [vmem:[#allocation7 + $0x8] sm:$0xff] %v325
    // Predicated region
    $region22: #{classifier_forward.1} parent=1 // pred_check
      _
    $region23: #{classifier_forward.1} parent=1 // pred_check_branch
      %330 = sbr.rel (0) target = $region25
    $region24: #{classifier_forward.1} parent=1 // pred_region
      %s332 = ssub.s32 256, 256
      %333 = vsyncadd [#allocation4], %s332
      %s335 = sshll.u32 [#allocation7], 4
      %s336 = int_to_ptr.vmem [resolvable:$true] %s335
      %338 = dma.vmem_to_hbm [thread:$0]  %s336, 256, %s3, [#allocation4]
    $region25: #{classifier_forward.1} parent=1 // pred_fallthru
      _
    // Predicated region
    $region26: #{classifier_forward.1} parent=1 // pred_check
      _
    $region27: #{classifier_forward.1} parent=1 // pred_check_branch
      %340 = sbr.rel (0) target = $region29
    $region28: #{classifier_forward.1} parent=1 // pred_region
      %341 = dma.done [#allocation4], 256
    $region29: #{classifier_forward.1} parent=1 // pred_fallthru
      _
    %342 = vsyncpa [#allocation3], 1
    %343 = vsyncpa [#allocation6], 1
    %344 = vsyncpa [#allocation4], 1

</llo_original>
